<compile_context>
chip_gen: v6e
topology: v6e:2x2x1
jax: 0.10.0
libtpu: 0.0.40
codegen_flags: <defaults>
</compile_context>

<pallas_src>
import functools

import jax
import jax.numpy as jnp
from jax.experimental import pallas as pl
from jax.experimental.pallas import tpu as pltpu


def _concat_pool_kernel(x_ref, out_ref, *, inv_hw):
    x = x_ref[...]                                            # (Nb, Cb, HW)
    # Global max over the spatial (lane) axis — exact in the input dtype.
    out_ref[:, 0, :, :] = jnp.max(x, axis=-1, keepdims=True)  # (Nb, Cb, 1)
    # Global mean — accumulate in f32, scale by precomputed 1/HW, cast back.
    s = jnp.sum(x.astype(jnp.float32), axis=-1, keepdims=True)
    out_ref[:, 1, :, :] = (s * inv_hw).astype(out_ref.dtype)


def _round_up(x, m):
    return ((x + m - 1) // m) * m


def _largest_divisor_le(n, cap):
    cap = max(1, min(n, cap))
    for d in range(cap, 0, -1):
        if n % d == 0:
            return d
    return 1


def _pick_blocks(N, C, HW, itemsize):
    """Choose (Nb, Cb, C_pad, vmem_limit_bytes) for the pooling grid."""
    try:
        info = pltpu.get_tpu_info()
        vmem_cap = int(getattr(info, "vmem_capacity_bytes", 128 << 20))
    except Exception:  # non-TPU / interpret fallback
        vmem_cap = 128 << 20
    # Multi-MiB blocks amortise the fixed per-step cost; keep v7x-class parts
    # (64 MiB VMEM per TensorCore) on a smaller budget than v5e/v6e (128 MiB).
    block_budget = (8 << 20) if vmem_cap <= (64 << 20) else (16 << 20)

    row_bytes = HW * itemsize
    slab_bytes = C * row_bytes

    if slab_bytes <= block_budget:
        # Whole channel axis fits in one block: block over the batch axis too.
        Cb, C_pad = C, C
        Nb = _largest_divisor_le(N, block_budget // max(1, slab_bytes))
    else:
        # Chunk channels (multiple of 8 for sublane tiling); pad C if needed.
        Nb = 1
        Cb = max(8, (block_budget // max(1, row_bytes)) // 8 * 8)
        Cb = min(Cb, _round_up(C, 8))
        C_pad = _round_up(C, Cb)

    # v7x has 2 TensorCores/chip: keep at least 2 parallel grid steps if we can.
    if (N // Nb) * (C_pad // Cb) < 2:
        if Nb > 1:
            Nb = _largest_divisor_le(N, Nb // 2)
        elif Cb == C_pad and Cb >= 16 and Cb % 16 == 0:
            Cb //= 2

    block_bytes = Nb * Cb * row_bytes
    # Double-buffered input + tiny outputs + headroom, capped to the part.
    vmem_limit = min(vmem_cap * 3 // 4,
                     max(2 * block_bytes + (4 << 20), 32 << 20))
    return Nb, Cb, C_pad, int(vmem_limit)


@functools.lru_cache(maxsize=None)
def _concat_pool_call(N, C_pad, HW, Nb, Cb, dtype_name, vmem_limit):
    dtype = jnp.dtype(dtype_name)
    itemsize = dtype.itemsize
    kernel = functools.partial(_concat_pool_kernel, inv_hw=1.0 / float(HW))
    cost = pl.CostEstimate(
        flops=2 * N * C_pad * HW,                       # max-cmp + sum-add per elem
        transcendentals=0,
        bytes_accessed=N * C_pad * HW * itemsize + 2 * N * C_pad * itemsize,
    )
    return pl.pallas_call(
        kernel,
        out_shape=jax.ShapeDtypeStruct((N, 2, C_pad, 1), dtype),
        grid=(N // Nb, C_pad // Cb),
        in_specs=[pl.BlockSpec((Nb, Cb, HW), lambda i, j: (i, j, 0))],
        out_specs=pl.BlockSpec((Nb, 2, Cb, 1), lambda i, j: (i, 0, j, 0)),
        compiler_params=pltpu.CompilerParams(
            dimension_semantics=("parallel", "parallel"),
            vmem_limit_bytes=vmem_limit),
        cost_estimate=cost,
    )


def adaptive_concat_pool2d(x, output_size=1):
    # TODO(synk): only output_size=1 (global pooling, the module default) is
    # lowered to Pallas; general adaptive window sizes (sz > 1) are not implemented.
    assert output_size == 1, "only output_size=1 is supported"
    N, C, H, W = x.shape
    HW = H * W
    xr = x.reshape(N, C, HW)                       # contiguous, free reshape
    Nb, Cb, C_pad, vmem_limit = _pick_blocks(N, C, HW, xr.dtype.itemsize)
    if C_pad != C:
        # Awkward channel count: zero-pad; padded channels produce harmless
        # per-channel results (reductions never cross channels) and are sliced off.
        xr = jnp.pad(xr, ((0, 0), (0, C_pad - C), (0, 0)))
    fn = _concat_pool_call(N, C_pad, HW, Nb, Cb, str(xr.dtype), vmem_limit)
    out = fn(xr)                                   # (N, 2, C_pad, 1): [max, avg]
    if C_pad != C:
        out = out[:, :, :C, :]
    # Row-major reshape gives [max(ch0..chC-1), avg(ch0..chC-1)] == torch.cat order.
    return out.reshape(N, 2 * C, 1, 1)


if __name__ == "__main__":
    key = jax.random.PRNGKey(0)
    x = jax.random.normal(key, (2, 4, 16, 16), dtype=jnp.float32)

    out = adaptive_concat_pool2d(x)
    out = jax.block_until_ready(out)

    assert out.shape == (2, 8, 1, 1), out.shape
    # Reference: AdaptiveMaxPool2d(1) / AdaptiveAvgPool2d(1) + concat on dim 1.
    ref = jnp.concatenate(
        [jnp.max(x, axis=(2, 3)), jnp.mean(x, axis=(2, 3))], axis=1
    ).reshape(2, 8, 1, 1)
    assert bool(jnp.all(jnp.isfinite(out)))
    assert jnp.allclose(out, ref, atol=1e-5, rtol=1e-5)
    print("KERNEL_OK")
</pallas_src>

<mosaic_0001>
module attributes {stable_mosaic.version = 11 : i64} {
  func.func @_concat_pool_kernel(%arg0: i32, %arg1: i32, %arg2: memref<1x4x256xf32, #tpu.memory_space<vmem>>, %arg3: memref<1x2x4x1xf32, #tpu.memory_space<vmem>>) attributes {dimension_semantics = [#tpu.dimension_semantics<parallel>, #tpu.dimension_semantics<parallel>], iteration_bounds = array<i64: 2, 1>, scalar_prefetch = 0 : i64, scratch_operands = 0 : i64, tpu.core_type = #tpu.core_type<tc>, window_params = [{transform_indices = @transform_0, window_bounds = array<i64: 1, 4, 256>}, {transform_indices = @transform_1, window_bounds = array<i64: 1, 2, 4, 1>}]} {
    %c0 = arith.constant 0 : index
    %c0_0 = arith.constant 0 : index
    %c0_1 = arith.constant 0 : index
    %0 = vector.load %arg2[%c0, %c0_0, %c0_1] : memref<1x4x256xf32, #tpu.memory_space<vmem>>, vector<1x4x256xf32>
    %cst = arith.constant dense<0xFF800000> : vector<1x4xf32>
    %1 = vector.multi_reduction <maximumf>, %0, %cst [2] : vector<1x4x256xf32> to vector<1x4xf32>
    %2 = vector.shape_cast %1 : vector<1x4xf32> to vector<1x4x1xf32>
    %c0_2 = arith.constant 0 : index
    %c0_3 = arith.constant 0 : index
    %c0_4 = arith.constant 0 : index
    %c0_5 = arith.constant 0 : index
    %3 = vector.load %arg3[%c0_2, %c0_3, %c0_4, %c0_5] : memref<1x2x4x1xf32, #tpu.memory_space<vmem>>, vector<1x1x4x1xf32>
    %4 = vector.shape_cast %3 : vector<1x1x4x1xf32> to vector<1x4x1xf32>
    %5 = vector.shape_cast %2 : vector<1x4x1xf32> to vector<1x1x4x1xf32>
    tpu.vector_store %arg3[%c0_2, %c0_3, %c0_4, %c0_5], %5 {strides = array<i32>} : memref<1x2x4x1xf32, #tpu.memory_space<vmem>>, vector<1x1x4x1xf32>,
    %cst_6 = arith.constant dense<0.000000e+00> : vector<1x4xf32>
    %6 = vector.multi_reduction <add>, %0, %cst_6 [2] : vector<1x4x256xf32> to vector<1x4xf32>
    %7 = vector.shape_cast %6 : vector<1x4xf32> to vector<1x4x1xf32>
    %cst_7 = arith.constant 3.906250e-03 : f32
    %8 = vector.broadcast %cst_7 : f32 to vector<1x4x1xf32>
    %9 = arith.mulf %7, %8 : vector<1x4x1xf32>
    %c0_8 = arith.constant 0 : index
    %c1 = arith.constant 1 : index
    %c0_9 = arith.constant 0 : index
    %c0_10 = arith.constant 0 : index
    %10 = vector.load %arg3[%c0_8, %c1, %c0_9, %c0_10] : memref<1x2x4x1xf32, #tpu.memory_space<vmem>>, vector<1x1x4x1xf32>
    %11 = vector.shape_cast %10 : vector<1x1x4x1xf32> to vector<1x4x1xf32>
    %12 = vector.shape_cast %9 : vector<1x4x1xf32> to vector<1x1x4x1xf32>
    tpu.vector_store %arg3[%c0_8, %c1, %c0_9, %c0_10], %12 {strides = array<i32>} : memref<1x2x4x1xf32, #tpu.memory_space<vmem>>, vector<1x1x4x1xf32>,
    return
  }
  func.func @transform_0(%arg0: i32, %arg1: i32) -> (i32, i32, i32) {
    %c0_i32 = arith.constant 0 : i32
    %c0_i32_0 = arith.constant 0 : i32
    return %arg0, %arg1, %c0_i32 : i32, i32, i32
  }
  func.func @transform_1(%arg0: i32, %arg1: i32) -> (i32, i32, i32, i32) {
    %c0_i32 = arith.constant 0 : i32
    %c0_i32_0 = arith.constant 0 : i32
    %c0_i32_1 = arith.constant 0 : i32
    return %arg0, %c0_i32, %arg1, %c0_i32_0 : i32, i32, i32, i32
  }
}

</mosaic_0001>

<llo_original>
// kernel: tpu_custom_call.1
$region0: #{tpu_custom_call.1}
  #allocation0 [shape = 'u32[]', space=smem, size = 0x4, offset = 0x4, fixed_abs, tag = 'smem constant byte address 0x4 - core index']
  #allocation1 [shape = 'u32[144,128]{1,0:T(1,128)}', space=vmem, size = 0x12000, scoped, tag = 'internal scratch']
  %s0 = inlined_call_operand.hbm [shape: f32[2,4,256], index: 0, kind: input, shape index: {}]
  %s1 = inlined_call_operand.vmem [shape: f32[2,2,4,1], index: 1, kind: output, shape index: {}]
  %s2 = sld [smem:[#allocation0]]
  $region41: #{tpu_custom_call.1} parent=0
    _
  %s4 = ssub.s32 1, %s2
  %s5 = scalar_select 0, %s4, %s2
  $region1: #{tpu_custom_call.1} parent=0
    #allocation2 [shape = 'u8[8192]{0}', space=vmem, size = 0x2000, scoped, tag = 'input window, operand 0']
    #allocation3 [shape = 's32[2]{0}', space=sflag, size = 0x8, scoped, tag = 'scoped memory for tpu_custom_call.1']
    %6 = vsyncpa [#allocation3], 0
    %s7 = scalar_lea.sflag [#allocation3], 1
    %8 = vsyncpa %s7, 0
    loop: start=0, step=1, limit=4
    $region2: #{tpu_custom_call.1} parent=1 // loop_pre_header
      _
    $region3: #{tpu_custom_call.1} parent=1 // loop_header
      %s10 = sphi 0, %s14
      %p11 = scmp.ge.s32.totalorder %s10, 4
      %s17 = sphi 0, %s29
      %s18 = sphi 0, %s25
      %s19 = sphi 0, %s17
      %s20 = sphi 0, %s18
      %s21 = sphi 0, %s19
      %s22 = sphi 0, %s20
      %s34 = sphi 0, %s36
      %s37 = sphi 0, %s34
      %s38 = sphi 0, %s37
      %s54 = sphi 0, %s38
      %s62 = sphi 0, %s64
      %s65 = sphi 0, %s62
      %s66 = sphi 0, %s65
      %s82 = sphi 0, %s66
    $region4: #{tpu_custom_call.1} parent=1 // loop_header_branch
      %13 = sbr.rel (%p11) target = $region8
    $region5: #{tpu_custom_call.1} parent=1 // loop_body
      %s15 = ssub.s32 %s10, 1
      %s16 = ssub.s32 %s10, 2
      %s23 = sadd.s32 1, %s18
      %p24 = scmp.ge.s32.totalorder %s23, 1
      %s25 = scalar_select %p24, 0, %s23
      %s26 = sadd.s32 1, %s17
      %s27 = scalar_select %p24, %s26, %s17
      %p28 = scmp.ge.s32.totalorder %s27, 2
      %s29 = scalar_select %p28, 0, %s27
      %s30 = ssub.s32 %s17, %s29
      %s31 = ssub.s32 %s18, %s25
      %s32 = sor.u32 %s30, %s31
      %p33 = scmp.eq.s32.totalorder %s32, 0
      %s35 = sadd.s32 %s34, 1
      %s36 = scalar_select %p33, %s34, %s35
      %p39 = pneg %p33
      %p40 = scmp.eq.s32.totalorder %s10, 1
      %p41 = por %p39, %p40
      %p42 = scmp.ne.s32.totalorder %s34, %s37
      %p43 = scmp.eq.s32.totalorder %s10, 0
      %p44 = por %p42, %p43
      %p45 = scmp.ne.s32.totalorder %s34, %s37
      %p46 = scmp.eq.s32.totalorder %s15, 1
      %p47 = por %p45, %p46
      %p48 = scmp.ne.s32.totalorder %s37, %s38
      %p49 = scmp.eq.s32.totalorder %s15, 0
      %p50 = por %p48, %p49
      %p51 = scmp.ne.s32.totalorder %s37, %s38
      %p52 = scmp.eq.s32.totalorder %s16, 1
      %p53 = por %p51, %p52
      %p55 = scmp.ne.s32.totalorder %s38, %s54
      %p56 = scmp.eq.s32.totalorder %s16, 0
      %p57 = por %p55, %p56
      %s58 = ssub.s32 %s17, %s29
      %s59 = ssub.s32 %s18, %s25
      %s60 = sor.u32 %s58, %s59
      %p61 = scmp.eq.s32.totalorder %s60, 0
      %s63 = sadd.s32 %s62, 1
      %s64 = scalar_select %p61, %s62, %s63
      %p67 = pneg %p61
      %p68 = scmp.eq.s32.totalorder %s10, 1
      %p69 = por %p67, %p68
      %p70 = scmp.ne.s32.totalorder %s62, %s65
      %p71 = scmp.eq.s32.totalorder %s10, 0
      %p72 = por %p70, %p71
      %p73 = scmp.ne.s32.totalorder %s62, %s65
      %p74 = scmp.eq.s32.totalorder %s15, 1
      %p75 = por %p73, %p74
      %p76 = scmp.ne.s32.totalorder %s65, %s66
      %p77 = scmp.eq.s32.totalorder %s15, 0
      %p78 = por %p76, %p77
      %p79 = scmp.ne.s32.totalorder %s65, %s66
      %p80 = scmp.eq.s32.totalorder %s16, 1
      %p81 = por %p79, %p80
      %p83 = scmp.ne.s32.totalorder %s66, %s82
      %p84 = scmp.eq.s32.totalorder %s16, 0
      %p85 = por %p83, %p84
      %p86 = scmp.le.s32.totalorder 1, %s10
      %p87 = scmp.lt.s32.totalorder %s10, 3
      %p88 = pnand %p86, %p87
      %p89 = pneg %p88
      // Predicated region
      $region9: #{tpu_custom_call.1} parent=5 // pred_check
        _
      $region10: #{tpu_custom_call.1} parent=5 // pred_check_branch
        %91 = sbr.rel (%p88) target = $region12
      $region11: #{tpu_custom_call.1} parent=5 // pred_region
        %s92 = ssub.s32 %s10, 1
      $region12: #{tpu_custom_call.1} parent=5 // pred_fallthru
        _
      %p93 = scmp.lt.s32.totalorder %s10, 2
      // Predicated region
      $region13: #{tpu_custom_call.1} parent=5 // pred_check
        %p94 = pneg %p93
      $region14: #{tpu_custom_call.1} parent=5 // pred_check_branch
        %96 = sbr.rel (%p94) target = $region16
      $region15: #{tpu_custom_call.1} parent=5 // pred_region
        // Predicated region
        $region17: #{tpu_custom_call.1} parent=15 // pred_check
          %p97 = pneg %p44
        $region18: #{tpu_custom_call.1} parent=15 // pred_check_branch
          %99 = sbr.rel (%p97) target = $region20
        $region19: #{tpu_custom_call.1} parent=15 // pred_region
          %s100 = sand.u32 %s34, 1
          %s101 = scalar_lea.sflag [#allocation3], %s100
          %s102 = sand.u32 %s34, 1
          %s103 = smul.addr %s102, 8
          %s104 = scalar_lea.vmem [#allocation2], %s103
          %s106 = ssub.s32 128, 128
          %107 = vsyncadd %s101, %s106
          %s108 = smul.addr %s18, 2
          %s109 = smul.addr %s17, 2
          %s110 = sadd.s32 %s108, %s109
          %s111 = smul.addr %s110, 64
          %s112 = scalar_lea.hbm %s0, %s111
          %s114 = sshll.u32 %s104, 4
          %s115 = int_to_ptr.vmem [resolvable:$true] %s114
          %117 = dma.hbm_to_vmem [thread:$0]  %s112, 128, %s115, %s101
        $region20: #{tpu_custom_call.1} parent=15 // pred_fallthru
          _
      $region16: #{tpu_custom_call.1} parent=5 // pred_fallthru
        _
      %p118 = scmp.le.s32.totalorder 1, %s10
      %p119 = scmp.lt.s32.totalorder %s10, 3
      %p120 = pnand %p118, %p119
      %p121 = pneg %p120
      // Predicated region
      $region21: #{tpu_custom_call.1} parent=5 // pred_check
        _
      $region22: #{tpu_custom_call.1} parent=5 // pred_check_branch
        %123 = sbr.rel (%p120) target = $region24
      $region23: #{tpu_custom_call.1} parent=5 // pred_region
        %s124 = ssub.s32 %s10, 1
        %s125 = sand.u32 %s37, 1
        %s126 = scalar_lea.sflag [#allocation3], %s125
        %s127 = sand.u32 %s37, 1
        %s128 = smul.addr %s127, 8
        %s129 = scalar_lea.vmem [#allocation2], %s128
        // Predicated region
        $region25: #{tpu_custom_call.1} parent=23 // pred_check
          %p130 = pneg %p50
        $region26: #{tpu_custom_call.1} parent=23 // pred_check_branch
          %132 = sbr.rel (%p130) target = $region28
        $region27: #{tpu_custom_call.1} parent=23 // pred_region
          %133 = dma.done %s126, 128
        $region28: #{tpu_custom_call.1} parent=23 // pred_fallthru
          _
        %s134 = sand.u32 %s37, 1
        %s135 = scalar_lea.sflag [#allocation3], %s134
        %s136 = sand.u32 %s37, 1
        %s137 = smul.addr %s136, 8
        %s138 = scalar_lea.vmem [#allocation2], %s137
        %p139 = pneg %p50
        %p140 = pneg %p47
        %p141 = pneg %p78
        %p142 = pneg %p75
        %p143 = scmp.lt.s32.totalorder %s19, 1
        %s144 = scalar_select %p143, %s19, 1
        %p145 = scmp.lt.s32.totalorder %s20, 0
        %s146 = scalar_select %p145, %s20, 0
        %s147 = smul.addr %s144, 2
        %s148 = sadd.s32 %s146, %s147
        %s149 = smul.addr %s148, 4
        %s150 = scalar_lea.vmem %s1, %s149
        %p151 = scmp.lt.s32.totalorder %s19, 1
        %s152 = scalar_select %p151, %s19, 1
        %p153 = scmp.lt.s32.totalorder %s20, 0
        %s154 = scalar_select %p153, %s20, 0
        %s155 = smul.addr %s152, 2
        %s156 = sadd.s32 %s154, %s155
        %s157 = smul.addr %s156, 4
        %s158 = scalar_lea.vmem %s1, %s157
        %v159 = vld [vmem:[%s129] sm:$0xff]
        %v161 = vcombine.high %v159, %v159
        %vm163 = vcmask 1043456
        %v164 = vsel %vm163, %v159, -inf
        %v165 = vsel %vm163, %v161, -inf
        %v166 = vmax.f32 %v164, %v165
        %167 = vmax.xlane.f32.xlu0 %v166
        %v168 = vpop.xlane.xlu0 %167
        %vm169 = vcmask 3072
        %170 = vst.msk [vmem:[%s158] sm:$0xf] %vm169, %v168
        %v171 = vsel %vm163, %v159, 0.0
        %v172 = vsel %vm163, %v161, 0.0
        %v173 = vadd.f32 %v171, %v172
        %174 = vadd.xlane.f32.xlu0 %v173
        %v175 = vpop.xlane.xlu0 %174
        %v176 = vmul.f32 %v175, 0.00390625
        %s177 = scalar_lea.vmem %s158, 4
        %178 = vst.msk [vmem:[%s177] sm:$0xf] %vm169, %v176
        %p179 = scmp.lt.s32.totalorder %s19, 1
        %s180 = scalar_select %p179, %s19, 1
        %p181 = scmp.lt.s32.totalorder %s20, 0
        %s182 = scalar_select %p181, %s20, 0
        %s183 = smul.addr %s180, 2
        %s184 = sadd.s32 %s182, %s183
        %s185 = smul.addr %s184, 4
        %s186 = scalar_lea.vmem %s1, %s185
        // Predicated region
        $region29: #{tpu_custom_call.1} parent=23 // pred_check
          %p187 = pneg %p75
        $region30: #{tpu_custom_call.1} parent=23 // pred_check_branch
          %189 = sbr.rel (%p187) target = $region32
        $region31: #{tpu_custom_call.1} parent=23 // pred_region
          _
        $region32: #{tpu_custom_call.1} parent=23 // pred_fallthru
          _
      $region24: #{tpu_custom_call.1} parent=5 // pred_fallthru
        _
      %p190 = scmp.le.s32.totalorder 2, %s10
      // Predicated region
      $region33: #{tpu_custom_call.1} parent=5 // pred_check
        %p191 = pneg %p190
      $region34: #{tpu_custom_call.1} parent=5 // pred_check_branch
        %193 = sbr.rel (%p191) target = $region36
      $region35: #{tpu_custom_call.1} parent=5 // pred_region
        %s194 = ssub.s32 %s10, 2
        // Predicated region
        $region37: #{tpu_custom_call.1} parent=35 // pred_check
          %p195 = pneg %p81
        $region38: #{tpu_custom_call.1} parent=35 // pred_check_branch
          %197 = sbr.rel (%p195) target = $region40
        $region39: #{tpu_custom_call.1} parent=35 // pred_region
          %p198 = scmp.lt.s32.totalorder %s21, 1
          %s199 = scalar_select %p198, %s21, 1
          %p200 = scmp.lt.s32.totalorder %s22, 0
          %s201 = scalar_select %p200, %s22, 0
          %s202 = smul.addr %s199, 2
          %s203 = sadd.s32 %s201, %s202
          %s204 = smul.addr %s203, 4
          %s205 = scalar_lea.vmem %s1, %s204
        $region40: #{tpu_custom_call.1} parent=35 // pred_fallthru
          _
      $region36: #{tpu_custom_call.1} parent=5 // pred_fallthru
        _
    $region6: #{tpu_custom_call.1} parent=1 // loop_footer
      %s14 = sadd.s32 1, %s10
    $region7: #{tpu_custom_call.1} parent=1 // loop_footer_branch
      %9 = sbr.rel target = $region3
    $region8: #{tpu_custom_call.1} parent=1 // loop_exit
      _
    %206 = vsyncpa [#allocation3], 1
    %s207 = scalar_lea.sflag [#allocation3], 1
    %208 = vsyncpa %s207, 1

</llo_original>
